<compile_context>
chip_gen: v7x
topology: tpu7x:2x2x1
jax: 0.10.0
libtpu: 0.0.40
codegen_flags: <defaults>
</compile_context>

<pallas_src>
import jax
import jax.numpy as jnp
from jax import lax
from jax.experimental import pallas as pl
from jax.experimental.pallas import tpu as pltpu


# Contract the LAST dim of both operands: x[M,K] . W[N,K] -> [M,N]  (== x @ W.T)
_NT = (((1,), (1,)), ((), ()))


def _round_up(x, m):
    return (x + m - 1) // m * m


def _ffn_resident_kernel(x_ref, wi_ref, wo_ref, o_ref):
    """Whole d_ff resident in VMEM: o = relu(x @ Wi.T) @ Wo.T for one row tile."""
    x = x_ref[...]
    h = lax.dot_general(x, wi_ref[...], _NT, preferred_element_type=jnp.float32)
    h = jnp.maximum(h, 0.0)  # ReLU
    # TODO(synk): training-mode dropout (pltpu.prng_random_bits mask) not
    # implemented; forward matches the module in eval mode (dropout==identity).
    y = lax.dot_general(h.astype(x.dtype), wo_ref[...], _NT,
                        preferred_element_type=jnp.float32)
    o_ref[...] = y.astype(o_ref.dtype)


def _ffn_tiled_kernel(x_ref, wi_ref, wo_ref, o_ref, acc_ref):
    """d_ff tiled along grid axis 1 (reduction); exact since ReLU is per-column."""
    k = pl.program_id(1)

    @pl.when(k == 0)
    def _():
        acc_ref[...] = jnp.zeros_like(acc_ref)

    x = x_ref[...]
    h = lax.dot_general(x, wi_ref[...], _NT, preferred_element_type=jnp.float32)
    h = jnp.maximum(h, 0.0)
    # TODO(synk): dropout omitted (eval-mode identity).
    acc_ref[...] += lax.dot_general(h.astype(x.dtype), wo_ref[...], _NT,
                                    preferred_element_type=jnp.float32)

    @pl.when(k == pl.num_programs(1) - 1)
    def _():
        o_ref[...] = acc_ref[...].astype(o_ref.dtype)


def _single_buffer_spec(block_shape, index_map):
    """BlockSpec for a resident (constant index_map) block: 1 buffer, not 2."""
    if hasattr(pl, "Buffered"):
        try:
            return pl.BlockSpec(block_shape, index_map,
                                pipeline_mode=pl.Buffered(1))
        except TypeError:  # older jax without pipeline_mode kwarg
            pass
    return pl.BlockSpec(block_shape, index_map)


def _choose_dff_tile(d_ff, d_model, itemsize, budget_bytes=40 << 20):
    """Keep weights fully resident if they fit a conservative (v7x-safe) budget,
    otherwise pick a 128-aligned d_ff chunk size that divides d_ff."""
    if 2 * d_ff * d_model * itemsize <= budget_bytes or d_ff % 128 != 0:
        return d_ff
    for cand in (2048, 1024, 512, 256, 128):
        # 2 weights x 2 pipeline buffers per chunk
        if d_ff % cand == 0 and 4 * cand * d_model * itemsize <= budget_bytes:
            return cand
    return d_ff


def t5_dense_relu_dense(hidden_states, wi, wo, *, tm=256, dff_tile=None,
                        compute_dtype=None):
    """Fused T5 FFN.

    hidden_states: [B, S, d_model]
    wi: [d_ff, d_model]   (nn.Linear weight layout: [out_features, in_features])
    wo: [d_model, d_ff]
    """
    B, S, d_model = hidden_states.shape
    d_ff = wi.shape[0]
    assert wi.shape == (d_ff, d_model)
    assert wo.shape == (d_model, d_ff)

    out_dtype = hidden_states.dtype
    if compute_dtype is not None:
        hidden_states = hidden_states.astype(compute_dtype)
        wi = wi.astype(compute_dtype)
        wo = wo.astype(compute_dtype)
    itemsize = jnp.dtype(hidden_states.dtype).itemsize
    out_itemsize = jnp.dtype(out_dtype).itemsize

    M = B * S
    x2d = hidden_states.reshape(M, d_model)

    # --- row tiling (pad M so the tile divides it evenly) ---
    tm = max(16, _round_up(tm, 16))          # sublane packing: 8 (f32) / 16 (bf16)
    tm_eff = min(tm, _round_up(M, 16))
    M_pad = _round_up(M, tm_eff)
    if M_pad != M:
        x2d = jnp.pad(x2d, ((0, M_pad - M), (0, 0)))
    num_m = M_pad // tm_eff

    # --- d_ff tiling (reduction axis) only if the weights don't fit VMEM ---
    if dff_tile is None:
        dff_tile = _choose_dff_tile(d_ff, d_model, itemsize)
    assert d_ff % dff_tile == 0
    num_k = d_ff // dff_tile
    resident = num_k == 1

    # --- VMEM budget hint ---
    w_bufs = 1 if resident else 2
    footprint = (2 * tm_eff * d_model * itemsize                  # x (double-buf)
                 + w_bufs * dff_tile * d_model * itemsize         # Wi chunk
                 + w_bufs * d_model * dff_tile * itemsize         # Wo chunk
                 + 2 * tm_eff * d_model * out_itemsize            # out (double-buf)
                 + tm_eff * d_model * 4                           # f32 accumulator
                 + tm_eff * dff_tile * 4)                         # f32 h intermediate
    vmem_limit = int(min(max(2 * footprint + (8 << 20), 32 << 20), 100 << 20))

    flops = 4 * M_pad * d_ff * d_model       # two matmuls, 2 flops per MAC
    bytes_accessed = ((x2d.size + wi.size + wo.size) * itemsize
                      + M_pad * d_model * out_itemsize)
    cost = pl.CostEstimate(flops=flops, transcendentals=0,
                           bytes_accessed=bytes_accessed)

    if resident:
        kernel = _ffn_resident_kernel
        grid = (num_m,)
        in_specs = [
            pl.BlockSpec((tm_eff, d_model), lambda i: (i, 0)),
            _single_buffer_spec((d_ff, d_model), lambda i: (0, 0)),   # Wi resident
            _single_buffer_spec((d_model, d_ff), lambda i: (0, 0)),   # Wo resident
        ]
        out_specs = pl.BlockSpec((tm_eff, d_model), lambda i: (i, 0))
        scratch = []
        dims = ("parallel",)
    else:
        kernel = _ffn_tiled_kernel
        grid = (num_m, num_k)                 # reduction axis last
        in_specs = [
            pl.BlockSpec((tm_eff, d_model), lambda i, k: (i, 0)),
            pl.BlockSpec((dff_tile, d_model), lambda i, k: (k, 0)),   # Wi chunk
            pl.BlockSpec((d_model, dff_tile), lambda i, k: (0, k)),   # Wo chunk
        ]
        out_specs = pl.BlockSpec((tm_eff, d_model), lambda i, k: (i, 0))
        scratch = [pltpu.VMEM((tm_eff, d_model), jnp.float32)]
        dims = ("parallel", "arbitrary")

    out2d = pl.pallas_call(
        kernel,
        out_shape=jax.ShapeDtypeStruct((M_pad, d_model), out_dtype),
        grid_spec=pltpu.PrefetchScalarGridSpec(
            num_scalar_prefetch=0,
            grid=grid,
            in_specs=in_specs,
            out_specs=out_specs,
            scratch_shapes=scratch,
        ),
        compiler_params=pltpu.CompilerParams(
            dimension_semantics=dims,
            vmem_limit_bytes=vmem_limit,
        ),
        cost_estimate=cost,
    )(x2d, wi, wo)

    if M_pad != M:
        out2d = out2d[:M]
    return out2d.reshape(B, S, d_model)


if __name__ == "__main__":
    # Small T5-like config (dropout_rate unused: eval-mode forward)
    batch, seq, d_model, d_ff = 2, 8, 32, 64

    key = jax.random.PRNGKey(0)
    kx, kwi, kwo = jax.random.split(key, 3)

    hidden_states = jax.random.normal(kx, (batch, seq, d_model), dtype=jnp.float32)
    # nn.Linear weight layouts: [out_features, in_features]
    wi = jax.random.normal(kwi, (d_ff, d_model), dtype=jnp.float32) * 0.05
    wo = jax.random.normal(kwo, (d_model, d_ff), dtype=jnp.float32) * 0.05

    ref = jnp.maximum(hidden_states @ wi.T, 0.0) @ wo.T

    # 1) Resident-weight path (whole d_ff in VMEM, single-buffered weights).
    out = jax.block_until_ready(t5_dense_relu_dense(hidden_states, wi, wo))
    assert out.shape == (batch, seq, d_model)
    assert jnp.allclose(out, ref, atol=1e-5, rtol=1e-5)

    # 2) d_ff-reduction path + token count not divisible by the row tile
    #    (exercises the accumulator kernel and the M-padding logic).
    batch2, seq2, d_ff2 = 2, 21, 256
    kx2, kwi2, kwo2 = jax.random.split(jax.random.PRNGKey(1), 3)
    hs2 = jax.random.normal(kx2, (batch2, seq2, d_model), dtype=jnp.float32)
    wi2 = jax.random.normal(kwi2, (d_ff2, d_model), dtype=jnp.float32) * 0.05
    wo2 = jax.random.normal(kwo2, (d_model, d_ff2), dtype=jnp.float32) * 0.05
    ref2 = jnp.maximum(hs2 @ wi2.T, 0.0) @ wo2.T
    out2 = jax.block_until_ready(t5_dense_relu_dense(hs2, wi2, wo2, dff_tile=128))
    assert out2.shape == (batch2, seq2, d_model)
    assert jnp.allclose(out2, ref2, atol=1e-5, rtol=1e-5)

    # 3) bf16 compute path (fast MXU path, f32 accumulation) — loose tolerance.
    out3 = jax.block_until_ready(
        t5_dense_relu_dense(hidden_states, wi, wo, compute_dtype=jnp.bfloat16))
    assert out3.shape == (batch, seq, d_model)
    assert jnp.allclose(out3, ref, atol=5e-2, rtol=5e-2)

    print("KERNEL_OK")
</pallas_src>

<mosaic_0001>
module attributes {stable_mosaic.version = 11 : i64} {
  func.func @_ffn_resident_kernel(%arg0: i32, %arg1: memref<16x32xf32, #tpu.memory_space<vmem>>, %arg2: memref<64x32xf32, #tpu.memory_space<vmem>>, %arg3: memref<32x64xf32, #tpu.memory_space<vmem>>, %arg4: memref<16x32xf32, #tpu.memory_space<vmem>>) attributes {dimension_semantics = [#tpu.dimension_semantics<parallel>], iteration_bounds = array<i64: 1>, scalar_prefetch = 0 : i64, scratch_operands = 0 : i64, tpu.core_type = #tpu.core_type<tc>, window_params = [{transform_indices = @transform_0, window_bounds = array<i64: 16, 32>}, {pipeline_mode = #tpu.pipeline_mode<synchronous>, transform_indices = @transform_1, window_bounds = array<i64: 64, 32>}, {pipeline_mode = #tpu.pipeline_mode<synchronous>, transform_indices = @transform_2, window_bounds = array<i64: 32, 64>}, {transform_indices = @transform_3, window_bounds = array<i64: 16, 32>}]} {
    %c0 = arith.constant 0 : index
    %c0_0 = arith.constant 0 : index
    %0 = vector.load %arg1[%c0, %c0_0] : memref<16x32xf32, #tpu.memory_space<vmem>>, vector<16x32xf32>
    %c0_1 = arith.constant 0 : index
    %c0_2 = arith.constant 0 : index
    %1 = vector.load %arg2[%c0_1, %c0_2] : memref<64x32xf32, #tpu.memory_space<vmem>>, vector<64x32xf32>
    %cst = arith.constant dense<0.000000e+00> : vector<16x64xf32>
    %2 = tpu.matmul %0, %1, %cst {dimension_numbers = #tpu.dot_dimension_numbers<[1], [1], [0], [0], [0, 0, 1, 0], [], []>} : vector<16x32xf32>, vector<64x32xf32>, vector<16x64xf32> -> vector<16x64xf32>
    %cst_3 = arith.constant 0.000000e+00 : f32
    %3 = vector.broadcast %cst_3 : f32 to vector<16x64xf32>
    %4 = arith.maximumf %2, %3 : vector<16x64xf32>
    %c0_4 = arith.constant 0 : index
    %c0_5 = arith.constant 0 : index
    %5 = vector.load %arg3[%c0_4, %c0_5] : memref<32x64xf32, #tpu.memory_space<vmem>>, vector<32x64xf32>
    %cst_6 = arith.constant dense<0.000000e+00> : vector<16x32xf32>
    %6 = tpu.matmul %4, %5, %cst_6 {dimension_numbers = #tpu.dot_dimension_numbers<[1], [1], [0], [0], [0, 0, 1, 0], [], []>} : vector<16x64xf32>, vector<32x64xf32>, vector<16x32xf32> -> vector<16x32xf32>
    %c0_7 = arith.constant 0 : index
    %c0_8 = arith.constant 0 : index
    %7 = vector.load %arg4[%c0_7, %c0_8] : memref<16x32xf32, #tpu.memory_space<vmem>>, vector<16x32xf32>
    tpu.vector_store %arg4[%c0_7, %c0_8], %6 {strides = array<i32>} : memref<16x32xf32, #tpu.memory_space<vmem>>, vector<16x32xf32>,
    return
  }
  func.func @transform_0(%arg0: i32) -> (i32, i32) {
    %c0_i32 = arith.constant 0 : i32
    %c0_i32_0 = arith.constant 0 : i32
    return %arg0, %c0_i32 : i32, i32
  }
  func.func @transform_1(%arg0: i32) -> (i32, i32) {
    %c0_i32 = arith.constant 0 : i32
    %c0_i32_0 = arith.constant 0 : i32
    %c0_i32_1 = arith.constant 0 : i32
    return %c0_i32, %c0_i32_0 : i32, i32
  }
  func.func @transform_2(%arg0: i32) -> (i32, i32) {
    %c0_i32 = arith.constant 0 : i32
    %c0_i32_0 = arith.constant 0 : i32
    %c0_i32_1 = arith.constant 0 : i32
    return %c0_i32, %c0_i32_0 : i32, i32
  }
  func.func @transform_3(%arg0: i32) -> (i32, i32) {
    %c0_i32 = arith.constant 0 : i32
    %c0_i32_0 = arith.constant 0 : i32
    return %arg0, %c0_i32 : i32, i32
  }
}

</mosaic_0001>

<llo_original>
// kernel: tpu_custom_call.1
$region0: #{tpu_custom_call.1}
  #allocation0 [shape = 'u32[]', space=smem, size = 0x4, offset = 0x4, fixed_abs, tag = 'smem constant byte address 0x4 - core index']
  #allocation1 [shape = 'u32[144,128]{1,0:T(1,128)}', space=vmem, size = 0x12000, scoped, tag = 'internal scratch']
  %s0 = inlined_call_operand.vmem [shape: f32[16,32], index: 0, kind: input, shape index: {}]
  %s1 = inlined_call_operand.vmem [shape: f32[64,32], index: 1, kind: input, shape index: {}]
  %s2 = inlined_call_operand.vmem [shape: f32[32,64], index: 2, kind: input, shape index: {}]
  %s3 = inlined_call_operand.hbm [shape: f32[16,32], index: 3, kind: output, shape index: {}]
  %s4 = sld [smem:[#allocation0]]
  $region22: #{tpu_custom_call.1} parent=0
    _
  %s6 = ssub.s32 1, %s4
  %s7 = scalar_select 0, %s6, %s4
  $region1: #{tpu_custom_call.1} parent=0
    #allocation2 [shape = 'u8[8192]{0}', space=vmem, size = 0x2000, scoped, tag = 'output window, operand 0, single buffered']
    #allocation3 [shape = 's32[1]{0}', space=sflag, size = 0x4, scoped, tag = 'scoped memory for tpu_custom_call.1']
    %8 = vsyncpa [#allocation3], 0
    // Predicated region
    $region2: #{tpu_custom_call.1} parent=1 // pred_check
      _
    $region3: #{tpu_custom_call.1} parent=1 // pred_check_branch
      %10 = sbr.rel (0) target = $region5
    $region4: #{tpu_custom_call.1} parent=1 // pred_region
      _
    $region5: #{tpu_custom_call.1} parent=1 // pred_fallthru
      _
    // Predicated region
    $region6: #{tpu_custom_call.1} parent=1 // pred_check
      _
    $region7: #{tpu_custom_call.1} parent=1 // pred_check_branch
      %12 = sbr.rel (0) target = $region9
    $region8: #{tpu_custom_call.1} parent=1 // pred_region
      _
    $region9: #{tpu_custom_call.1} parent=1 // pred_fallthru
      _
    // Predicated region
    $region10: #{tpu_custom_call.1} parent=1 // pred_check
      _
    $region11: #{tpu_custom_call.1} parent=1 // pred_check_branch
      %14 = sbr.rel (0) target = $region13
    $region12: #{tpu_custom_call.1} parent=1 // pred_region
      _
    $region13: #{tpu_custom_call.1} parent=1 // pred_fallthru
      _
    %v15 = vld [vmem:[%s0] sm:$0xff]
    %v16 = vld [vmem:[%s0 + $0x8] sm:$0xff]
    %v17 = vld [vmem:[%s1] sm:$0xff]
    %v18 = vld [vmem:[%s1 + $0x8] sm:$0xff]
    %v19 = vld [vmem:[%s1 + $0x10] sm:$0xff]
    %v20 = vld [vmem:[%s1 + $0x18] sm:$0xff]
    %v21 = vld [vmem:[%s1 + $0x20] sm:$0xff]
    %v22 = vld [vmem:[%s1 + $0x28] sm:$0xff]
    %v23 = vld [vmem:[%s1 + $0x30] sm:$0xff]
    %v24 = vld [vmem:[%s1 + $0x38] sm:$0xff]
    %vm25 = vcmask 261120
    %v27 = vsel %vm25, %v15, 0
    %v30 = vsel %vm25, %v16, 0
    %v33 = vsel %vm25, %v17, 0
    %v36 = vsel %vm25, %v18, 0
    %v39 = vsel %vm25, %v19, 0
    %v42 = vsel %vm25, %v20, 0
    %v45 = vsel %vm25, %v21, 0
    %v48 = vsel %vm25, %v22, 0
    %v51 = vsel %vm25, %v23, 0
    %v54 = vsel %vm25, %v24, 0
    %56 = vmatprep.subr.mxu0 0.0
    %57 = vmatpush1.xpose.msra.mxu0 %v33
    %58 = vmatprep.subr.mxu0 0.0
    %59 = vmatpush1.xpose.msra.mxu0 %v36
    %60 = vmatprep.subr.mxu0 0.0
    %61 = vmatpush1.xpose.msra.mxu0 %v39
    %62 = vmatprep.subr.mxu0 0.0
    %63 = vmatpush1.xpose.msra.mxu0 %v42
    %64 = vmatprep.subr.mxu0 0.0
    %65 = vmatpush1.xpose.msra.mxu0 %v45
    %66 = vmatprep.subr.mxu0 0.0
    %67 = vmatpush1.xpose.msra.mxu0 %v48
    %68 = vmatprep.subr.mxu0 0.0
    %69 = vmatpush1.xpose.msra.mxu0 %v51
    %70 = vmatprep.subr.mxu0 0.0
    %71 = vmatpush1.xpose.msra.mxu0 %v54
    %72 = vmatprep.subr.mxu0 0.0
    %73 = vmatpush1.xpose.msra.mxu0 0.0
    %74 = vmatprep.subr.mxu0 0.0
    %75 = vmatpush1.xpose.msra.mxu0 0.0
    %76 = vmatprep.subr.mxu0 0.0
    %77 = vmatpush1.xpose.msra.mxu0 0.0
    %78 = vmatprep.subr.mxu0 0.0
    %79 = vmatpush1.xpose.msra.mxu0 0.0
    %80 = vmatprep.subr.mxu0 0.0
    %81 = vmatpush1.xpose.msra.mxu0 0.0
    %82 = vmatprep.subr.mxu0 0.0
    %83 = vmatpush1.xpose.msra.mxu0 0.0
    %84 = vmatprep.subr.mxu0 0.0
    %85 = vmatpush1.xpose.msra.mxu0 0.0
    %86 = vmatprep.subr.mxu0 0.0
    %87 = vmatpush1.xpose.msra.mxu0 0.0
    %88 = vmatprep.subr.mxu0 0.0
    %89 = vmatpush1.xpose.msra.mxu0 0.0
    %90 = vmatprep.subr.mxu0 0.0
    %91 = vmatpush1.xpose.msra.mxu0 0.0
    %92 = vmatprep.subr.mxu0 0.0
    %93 = vmatpush1.xpose.msra.mxu0 0.0
    %94 = vmatprep.subr.mxu0 0.0
    %95 = vmatpush1.xpose.msra.mxu0 0.0
    %96 = vmatprep.subr.mxu0 0.0
    %97 = vmatpush1.xpose.msra.mxu0 0.0
    %98 = vmatprep.subr.mxu0 0.0
    %99 = vmatpush1.xpose.msra.mxu0 0.0
    %100 = vmatprep.subr.mxu0 0.0
    %101 = vmatpush1.xpose.msra.mxu0 0.0
    %102 = vmatprep.subr.mxu0 0.0
    %103 = vmatpush1.xpose.msra.mxu0 0.0
    %104 = vmatprep.subr.mxu0 0.0
    %105 = vmatpush1.xpose.msra.mxu0 0.0
    %106 = vmatprep.subr.mxu0 0.0
    %107 = vmatpush1.xpose.msra.mxu0 0.0
    %108 = vmatprep.subr.mxu0 0.0
    %109 = vmatpush1.xpose.msra.mxu0 0.0
    %110 = vmatprep.subr.mxu0 0.0
    %111 = vmatpush1.xpose.msra.mxu0 0.0
    %112 = vmatprep.subr.mxu0 0.0
    %113 = vmatpush1.xpose.msra.mxu0 0.0
    %114 = vmatprep.subr.mxu0 0.0
    %115 = vmatpush1.xpose.msra.mxu0 0.0
    %116 = vmatprep.subr.mxu0 0.0
    %117 = vmatpush1.xpose.msra.mxu0 0.0
    %118 = vmatprep.subr.mxu0 0.0
    %119 = vmatpush1.xpose.msra.mxu0 0.0
    %120 = vmatprep.mubr.f32.mxu0 0.0
    %121 = vmatmul.mubr.f32.gmra.mrb[0].mxu0 %v27
    %v122 = vpop.f32.mrb[0].mxu0
    %v123 = vadd.f32 0.0, %v122
    %v124 = vpop.f32.mrb[0].mxu0
    %125 = vmatprep.mubr.f32.mxu0 0.0
    %126 = vmatmul.mubr.f32.gmra.mrb[0].mxu0 %v30
    %v127 = vpop.f32.mrb[0].mxu0
    %v128 = vadd.f32 0.0, %v127
    %v129 = vpop.f32.mrb[0].mxu0
    %130 = vdwg.mxu0
    %v131 = vmax.f32 %v123, 0.0
    %v132 = vmax.f32 %v128, 0.0
    %v133 = vld [vmem:[%s2] sm:$0xff]
    %v134 = vld [vmem:[%s2 + $0x8] sm:$0xff]
    %v135 = vld [vmem:[%s2 + $0x10] sm:$0xff]
    %v136 = vld [vmem:[%s2 + $0x18] sm:$0xff]
    %vm137 = vcmask 523264
    %v139 = vsel %vm137, %v131, 0
    %v142 = vsel %vm137, %v132, 0
    %v145 = vsel %vm137, %v133, 0
    %v148 = vsel %vm137, %v134, 0
    %v151 = vsel %vm137, %v135, 0
    %v154 = vsel %vm137, %v136, 0
    %156 = vmatprep.subr.mxu0 0.0
    %157 = vmatpush1.xpose.msra.mxu0 %v145
    %158 = vmatprep.subr.mxu0 0.0
    %159 = vmatpush1.xpose.msra.mxu0 %v148
    %160 = vmatprep.subr.mxu0 0.0
    %161 = vmatpush1.xpose.msra.mxu0 %v151
    %162 = vmatprep.subr.mxu0 0.0
    %163 = vmatpush1.xpose.msra.mxu0 %v154
    %164 = vmatprep.subr.mxu0 0.0
    %165 = vmatpush1.xpose.msra.mxu0 0.0
    %166 = vmatprep.subr.mxu0 0.0
    %167 = vmatpush1.xpose.msra.mxu0 0.0
    %168 = vmatprep.subr.mxu0 0.0
    %169 = vmatpush1.xpose.msra.mxu0 0.0
    %170 = vmatprep.subr.mxu0 0.0
    %171 = vmatpush1.xpose.msra.mxu0 0.0
    %172 = vmatprep.subr.mxu0 0.0
    %173 = vmatpush1.xpose.msra.mxu0 0.0
    %174 = vmatprep.subr.mxu0 0.0
    %175 = vmatpush1.xpose.msra.mxu0 0.0
    %176 = vmatprep.subr.mxu0 0.0
    %177 = vmatpush1.xpose.msra.mxu0 0.0
    %178 = vmatprep.subr.mxu0 0.0
    %179 = vmatpush1.xpose.msra.mxu0 0.0
    %180 = vmatprep.subr.mxu0 0.0
    %181 = vmatpush1.xpose.msra.mxu0 0.0
    %182 = vmatprep.subr.mxu0 0.0
    %183 = vmatpush1.xpose.msra.mxu0 0.0
    %184 = vmatprep.subr.mxu0 0.0
    %185 = vmatpush1.xpose.msra.mxu0 0.0
    %186 = vmatprep.subr.mxu0 0.0
    %187 = vmatpush1.xpose.msra.mxu0 0.0
    %188 = vmatprep.subr.mxu0 0.0
    %189 = vmatpush1.xpose.msra.mxu0 0.0
    %190 = vmatprep.subr.mxu0 0.0
    %191 = vmatpush1.xpose.msra.mxu0 0.0
    %192 = vmatprep.subr.mxu0 0.0
    %193 = vmatpush1.xpose.msra.mxu0 0.0
    %194 = vmatprep.subr.mxu0 0.0
    %195 = vmatpush1.xpose.msra.mxu0 0.0
    %196 = vmatprep.subr.mxu0 0.0
    %197 = vmatpush1.xpose.msra.mxu0 0.0
    %198 = vmatprep.subr.mxu0 0.0
    %199 = vmatpush1.xpose.msra.mxu0 0.0
    %200 = vmatprep.subr.mxu0 0.0
    %201 = vmatpush1.xpose.msra.mxu0 0.0
    %202 = vmatprep.subr.mxu0 0.0
    %203 = vmatpush1.xpose.msra.mxu0 0.0
    %204 = vmatprep.subr.mxu0 0.0
    %205 = vmatpush1.xpose.msra.mxu0 0.0
    %206 = vmatprep.subr.mxu0 0.0
    %207 = vmatpush1.xpose.msra.mxu0 0.0
    %208 = vmatprep.subr.mxu0 0.0
    %209 = vmatpush1.xpose.msra.mxu0 0.0
    %210 = vmatprep.subr.mxu0 0.0
    %211 = vmatpush1.xpose.msra.mxu0 0.0
    %212 = vmatprep.subr.mxu0 0.0
    %213 = vmatpush1.xpose.msra.mxu0 0.0
    %214 = vmatprep.subr.mxu0 0.0
    %215 = vmatpush1.xpose.msra.mxu0 0.0
    %216 = vmatprep.subr.mxu0 0.0
    %217 = vmatpush1.xpose.msra.mxu0 0.0
    %218 = vmatprep.subr.mxu0 0.0
    %219 = vmatpush1.xpose.msra.mxu0 0.0
    %220 = vmatprep.mubr.f32.mxu0 0.0
    %221 = vmatmul.mubr.f32.gmra.mrb[0].mxu0 %v139
    %v222 = vpop.f32.mrb[0].mxu0
    %v223 = vadd.f32 0.0, %v222
    %v224 = vpop.f32.mrb[0].mxu0
    %225 = vmatprep.mubr.f32.mxu0 0.0
    %226 = vmatmul.mubr.f32.gmra.mrb[0].mxu0 %v142
    %v227 = vpop.f32.mrb[0].mxu0
    %v228 = vadd.f32 0.0, %v227
    %v229 = vpop.f32.mrb[0].mxu0
    %230 = vdwg.mxu0
    %231 = vst.msk [vmem:[#allocation2] sm:$0xff] %vm25, %v223
    %232 = vst.msk [vmem:[#allocation2 + $0x8] sm:$0xff] %vm25, %v228
    // Predicated region
    $region14: #{tpu_custom_call.1} parent=1 // pred_check
      _
    $region15: #{tpu_custom_call.1} parent=1 // pred_check_branch
      %234 = sbr.rel (0) target = $region17
    $region16: #{tpu_custom_call.1} parent=1 // pred_region
      %s236 = ssub.s32 256, 256
      %237 = vsyncadd [#allocation3], %s236
      %s238 = sshll.u32 [#allocation2], 4
      %s239 = int_to_ptr.vmem [resolvable:$true] %s238
      %244 = dma.vmem_to_hbm [thread:$0]  %s239, 256, %s3, [#allocation3], 128, 128, 8
    $region17: #{tpu_custom_call.1} parent=1 // pred_fallthru
      _
    // Predicated region
    $region18: #{tpu_custom_call.1} parent=1 // pred_check
      _
    $region19: #{tpu_custom_call.1} parent=1 // pred_check_branch
      %246 = sbr.rel (0) target = $region21
    $region20: #{tpu_custom_call.1} parent=1 // pred_region
      %247 = dma.done [#allocation3], 256
    $region21: #{tpu_custom_call.1} parent=1 // pred_fallthru
      _
    %248 = vsyncpa [#allocation3], 1

</llo_original>
